<compile_context>
chip_gen: v7x
topology: tpu7x:2x2x1
jax: 0.10.0
libtpu: 0.0.40
codegen_flags: <defaults>
</compile_context>

<pallas_src>
import functools

import jax
import jax.numpy as jnp
from jax.experimental import pallas as pl
from jax.experimental.pallas import tpu as pltpu


def _round_up(v, m):
    return ((v + m - 1) // m) * m


def gcn_kernel(x_ref, a_ref, w_ref, b_ref, o_ref):
    """One grid step processes Bb whole (padded) graphs.

    x_ref: (Bb, Np, Fp) f32  node features (zero-padded)
    a_ref: (Bb, Np, Np) f32  dense adjacency, a[b, src, dst]
    w_ref: (Fp, Hp)     f32  GCN weight (zero-padded)
    b_ref: (1, Hp)      f32  GCN bias   (zero-padded)
    o_ref: (Bb, Np, Hp) f32
    """
    Bb, Np, Fp = x_ref.shape
    Hp = w_ref.shape[1]

    x = x_ref[...]                                             # (Bb, Np, Fp)
    a = a_ref[...]                                             # (Bb, Np, Np)

    # Off-diagonal binarized adjacency.  The self-loop (weight 1, as produced
    # by add_remaining_self_loops on binarized weights) is handled analytically
    # below, so the diagonal is zeroed here.  This mask is the only N×N
    # auxiliary and the only live N×N temporary (kept in bf16 for the MXU).
    row = jax.lax.broadcasted_iota(jnp.int32, (Np, Np), 0)
    col = jax.lax.broadcasted_iota(jnp.int32, (Np, Np), 1)
    off_diag = (row != col)[None, :, :]                        # (1, Np, Np)
    a_off = jnp.where(off_diag, (a != 0.0).astype(jnp.float32), 0.0)

    # In-degree at dst (+1 for the self-loop).  Padded nodes get deg == 1.
    deg = jnp.sum(a_off, axis=1) + 1.0                         # (Bb, Np)
    dinv = jax.lax.rsqrt(deg)[:, :, None]                      # (Bb, Np, 1) f32

    # Symmetric normalization folded into vectors (no a_norm materialized):
    #   out_feat = dinv ⊙ (A_offᵀ @ (dinv ⊙ x)) + dinv² ⊙ x
    zs = (dinv * x).astype(jnp.bfloat16)                       # (Bb, Np, Fp)
    a_bf = a_off.astype(jnp.bfloat16)                          # exact in bf16

    aggs = []
    for i in range(Bb):  # Bb is small & static (VMEM-bounded graphs per step)
        # Contract the src axis directly (transposed-LHS matmul, no explicit
        # N×N transpose):  agg[dst, f] = sum_src a[src, dst] * zs[src, f]
        aggs.append(
            jax.lax.dot_general(
                a_bf[i], zs[i],
                dimension_numbers=(((0,), (0,)), ((), ())),
                preferred_element_type=jnp.float32,
            )
        )
    agg = jnp.stack(aggs, axis=0)                              # (Bb, Np, Fp) f32

    out_feat = dinv * agg + (dinv * dinv) * x                  # (Bb, Np, Fp) f32

    # Single lane-dense feature transform for all graphs in the block.
    out2d = jnp.dot(out_feat.reshape(Bb * Np, Fp), w_ref[...],
                    preferred_element_type=jnp.float32)        # (Bb*Np, Hp)
    out2d = out2d + b_ref[...]                                 # + (1, Hp)
    o_ref[...] = out2d.reshape(Bb, Np, Hp).astype(o_ref.dtype)


def _pick_graphs_per_step(B, n_pad, f_pad, h_pad, vmem_budget_bytes):
    # Per-graph block bytes (f32 X + A + out); pipeline double-buffers them.
    per_graph = 4 * n_pad * (f_pad + n_pad + h_pad)
    best = 1
    for bb in range(1, B + 1):
        if B % bb == 0 and 2 * bb * per_graph <= vmem_budget_bytes:
            best = bb
    return best


@functools.partial(jax.jit, static_argnames=("graphs_per_step",))
def gnn_wrapper_forward(X, A, W, bias, *, graphs_per_step=None):
    """Forward of GNNwrapper with a GCNConv gnn: (B,N,F),(B,N,N) -> (B,N,H).

    A is the dense adjacency with A[b, src, dst] (messages flow src -> dst,
    matching dense_to_geometric / from_scipy_sparse_matrix conventions).
    """
    B, N, F = X.shape
    H = W.shape[1]

    # Lane-dense / tile-aligned padding: feature dims to 128 lanes, node dim
    # to 8 sublanes.  Padded nodes are isolated self-loop nodes with zero
    # features: they neither affect nor receive from real nodes.
    Np = _round_up(N, 8)
    Fp = _round_up(F, 128)
    Hp = _round_up(H, 128)

    Xp = jnp.pad(X.astype(jnp.float32), ((0, 0), (0, Np - N), (0, Fp - F)))
    Ap = jnp.pad(A.astype(jnp.float32), ((0, 0), (0, Np - N), (0, Np - N)))
    Wp = jnp.pad(W.astype(jnp.float32), ((0, Fp - F), (0, Hp - H)))
    bp = jnp.pad(bias.astype(jnp.float32), (0, Hp - H)).reshape(1, Hp)

    if graphs_per_step is None:
        # Keep pipelined blocks within ~24 MiB of the default scoped VMEM.
        graphs_per_step = _pick_graphs_per_step(B, Np, Fp, Hp, 24 * 1024 * 1024)
    Bb = graphs_per_step
    assert B % Bb == 0, "graphs_per_step must divide the batch"
    num_steps = B // Bb

    cost = pl.CostEstimate(
        flops=2 * B * Np * (Np * Fp + Fp * Hp) + 6 * B * Np * Fp,
        transcendentals=B * Np,
        bytes_accessed=4 * (Xp.size + Ap.size + Wp.size + bp.size + B * Np * Hp),
    )

    out = pl.pallas_call(
        gcn_kernel,
        out_shape=jax.ShapeDtypeStruct((B, Np, Hp), jnp.float32),
        grid_spec=pltpu.PrefetchScalarGridSpec(
            num_scalar_prefetch=0,
            grid=(num_steps,),
            in_specs=[
                pl.BlockSpec((Bb, Np, Fp), lambda g: (g, 0, 0)),
                pl.BlockSpec((Bb, Np, Np), lambda g: (g, 0, 0)),
                pl.BlockSpec((Fp, Hp), lambda g: (0, 0)),
                pl.BlockSpec((1, Hp), lambda g: (0, 0)),
            ],
            out_specs=pl.BlockSpec((Bb, Np, Hp), lambda g: (g, 0, 0)),
        ),
        compiler_params=pltpu.CompilerParams(
            dimension_semantics=("parallel",),
        ),
        cost_estimate=cost,
    )(Xp, Ap, Wp, bp)

    # TODO(synk): for very large N on v7x (64 MiB VMEM), row-tile the A block
    # (inner grid axis over dst tiles with pipeline_mode=pl.Buffered(3))
    # instead of loading whole (Np, Np) graphs per step.
    return out[:, :N, :H]


def reference_forward(X, A, W, bias):
    # Pure-JAX f32 reference of the module's math (for a sanity check).
    B, N, F = X.shape
    a_bin = (jnp.swapaxes(A, 1, 2) != 0).astype(jnp.float32)
    eye = jnp.eye(N, dtype=jnp.float32)[None]
    a_hat = jnp.maximum(a_bin, eye)
    deg = jnp.sum(a_hat, axis=2, keepdims=True)
    dinv = 1.0 / jnp.sqrt(deg)
    a_norm = dinv * a_hat * jnp.swapaxes(dinv, 1, 2)
    xw = jnp.einsum("bnf,fh->bnh", X, W)
    return jnp.einsum("bnm,bmh->bnh", a_norm, xw) + bias[None, None, :]


if __name__ == "__main__":
    key = jax.random.PRNGKey(0)
    k_x, k_a, k_w, k_b = jax.random.split(key, 4)

    B, N, F, H = 2, 8, 16, 32           # batch, n_agents, in-features, hidden

    X = jax.random.normal(k_x, (B, N, F), dtype=jnp.float32)
    # Dense adjacency with ~50% edge density (only structure matters: the
    # default input_func drops edge_attr).
    A = (jax.random.uniform(k_a, (B, N, N)) > 0.5).astype(jnp.float32)

    # Deterministic GCN parameters (Glorot-ish scale).
    W = jax.random.normal(k_w, (F, H), dtype=jnp.float32) * (1.0 / jnp.sqrt(F))
    bias = jax.random.normal(k_b, (H,), dtype=jnp.float32) * 0.01

    out = jax.block_until_ready(gnn_wrapper_forward(X, A, W, bias))
    ref = reference_forward(X, A, W, bias)

    assert out.shape == (B, N, H)
    max_err = float(jnp.max(jnp.abs(out - ref)))
    # bf16 propagation matmul (f32 accumulation) -> bf16-level tolerance.
    assert jnp.allclose(out, ref, atol=5e-2, rtol=5e-2), max_err

    print("KERNEL_OK")
</pallas_src>

<mosaic_0001>
module attributes {stable_mosaic.version = 11 : i64} {
  func.func @gcn_kernel(%arg0: i32, %arg1: memref<2x8x128xf32, #tpu.memory_space<vmem>>, %arg2: memref<2x8x8xf32, #tpu.memory_space<vmem>>, %arg3: memref<128x128xf32, #tpu.memory_space<vmem>>, %arg4: memref<1x128xf32, #tpu.memory_space<vmem>>, %arg5: memref<2x8x128xf32, #tpu.memory_space<vmem>>) attributes {dimension_semantics = [#tpu.dimension_semantics<parallel>], iteration_bounds = array<i64: 1>, scalar_prefetch = 0 : i64, scratch_operands = 0 : i64, tpu.core_type = #tpu.core_type<tc>, window_params = [{transform_indices = @transform_0, window_bounds = array<i64: 2, 8, 128>}, {transform_indices = @transform_1, window_bounds = array<i64: 2, 8, 8>}, {pipeline_mode = #tpu.pipeline_mode<synchronous>, transform_indices = @transform_2, window_bounds = array<i64: 128, 128>}, {pipeline_mode = #tpu.pipeline_mode<synchronous>, transform_indices = @transform_3, window_bounds = array<i64: 1, 128>}, {transform_indices = @transform_4, window_bounds = array<i64: 2, 8, 128>}]} {
    %c0 = arith.constant 0 : index
    %c0_0 = arith.constant 0 : index
    %c0_1 = arith.constant 0 : index
    %0 = vector.load %arg1[%c0, %c0_0, %c0_1] : memref<2x8x128xf32, #tpu.memory_space<vmem>>, vector<2x8x128xf32>
    %c0_2 = arith.constant 0 : index
    %c0_3 = arith.constant 0 : index
    %c0_4 = arith.constant 0 : index
    %1 = vector.load %arg2[%c0_2, %c0_3, %c0_4] : memref<2x8x8xf32, #tpu.memory_space<vmem>>, vector<2x8x8xf32>
    %2 = tpu.iota {dimensions = array<i32: 0>} : vector<8x8xi32>
    %3 = tpu.iota {dimensions = array<i32: 1>} : vector<8x8xi32>
    %4 = arith.cmpi ne, %2, %3 : vector<8x8xi32>
    %5 = vector.shape_cast %4 : vector<8x8xi1> to vector<1x8x8xi1>
    %cst = arith.constant 0.000000e+00 : f32
    %6 = vector.broadcast %cst : f32 to vector<2x8x8xf32>
    %7 = arith.cmpf one, %1, %6 : vector<2x8x8xf32>
    %8 = arith.extui %7 : vector<2x8x8xi1> to vector<2x8x8xi32>
    %9 = arith.sitofp %8 : vector<2x8x8xi32> to vector<2x8x8xf32>
    %cst_5 = arith.constant 0.000000e+00 : f32
    %10 = vector.shape_cast %5 : vector<1x8x8xi1> to vector<1x8x8xi1>
    %11 = vector.broadcast %10 : vector<1x8x8xi1> to vector<2x8x8xi1>
    %12 = vector.broadcast %cst_5 : f32 to vector<2x8x8xf32>
    %13 = arith.select %11, %9, %12 : vector<2x8x8xi1>, vector<2x8x8xf32>
    %cst_6 = arith.constant dense<0.000000e+00> : vector<2x8xf32>
    %14 = vector.multi_reduction <add>, %13, %cst_6 [1] : vector<2x8x8xf32> to vector<2x8xf32>
    %cst_7 = arith.constant 1.000000e+00 : f32
    %15 = vector.broadcast %cst_7 : f32 to vector<2x8xf32>
    %16 = arith.addf %14, %15 : vector<2x8xf32>
    %17 = math.rsqrt %16 : vector<2x8xf32>
    %18 = vector.shape_cast %17 : vector<2x8xf32> to vector<2x8x1xf32>
    %19 = vector.broadcast %18 : vector<2x8x1xf32> to vector<2x8x128xf32>
    %20 = arith.mulf %19, %0 : vector<2x8x128xf32>
    %21 = arith.truncf %20 : vector<2x8x128xf32> to vector<2x8x128xbf16>
    %22 = arith.truncf %13 : vector<2x8x8xf32> to vector<2x8x8xbf16>
    %23 = vector.extract_strided_slice %22 {offsets = [0, 0, 0], sizes = [1, 8, 8], strides = [1, 1, 1]} : vector<2x8x8xbf16> to vector<1x8x8xbf16>
    %24 = vector.shape_cast %23 : vector<1x8x8xbf16> to vector<8x8xbf16>
    %25 = vector.extract_strided_slice %21 {offsets = [0, 0, 0], sizes = [1, 8, 128], strides = [1, 1, 1]} : vector<2x8x128xbf16> to vector<1x8x128xbf16>
    %26 = vector.shape_cast %25 : vector<1x8x128xbf16> to vector<8x128xbf16>
    %cst_8 = arith.constant dense<0.000000e+00> : vector<8x128xf32>
    %27 = tpu.matmul %24, %26, %cst_8 {dimension_numbers = #tpu.dot_dimension_numbers<[0], [0], [1], [1], [0, 1, 1, 1], [], []>} : vector<8x8xbf16>, vector<8x128xbf16>, vector<8x128xf32> -> vector<8x128xf32>
    %28 = vector.extract_strided_slice %22 {offsets = [1, 0, 0], sizes = [1, 8, 8], strides = [1, 1, 1]} : vector<2x8x8xbf16> to vector<1x8x8xbf16>
    %29 = vector.shape_cast %28 : vector<1x8x8xbf16> to vector<8x8xbf16>
    %30 = vector.extract_strided_slice %21 {offsets = [1, 0, 0], sizes = [1, 8, 128], strides = [1, 1, 1]} : vector<2x8x128xbf16> to vector<1x8x128xbf16>
    %31 = vector.shape_cast %30 : vector<1x8x128xbf16> to vector<8x128xbf16>
    %cst_9 = arith.constant dense<0.000000e+00> : vector<8x128xf32>
    %32 = tpu.matmul %29, %31, %cst_9 {dimension_numbers = #tpu.dot_dimension_numbers<[0], [0], [1], [1], [0, 1, 1, 1], [], []>} : vector<8x8xbf16>, vector<8x128xbf16>, vector<8x128xf32> -> vector<8x128xf32>
    %33 = vector.shape_cast %27 : vector<8x128xf32> to vector<1x8x128xf32>
    %34 = vector.shape_cast %32 : vector<8x128xf32> to vector<1x8x128xf32>
    %35 = tpu.concatenate %33, %34 in 0 : vector<1x8x128xf32>, vector<1x8x128xf32> -> vector<2x8x128xf32>
    %36 = vector.broadcast %18 : vector<2x8x1xf32> to vector<2x8x128xf32>
    %37 = arith.mulf %36, %35 : vector<2x8x128xf32>
    %38 = arith.mulf %18, %18 : vector<2x8x1xf32>
    %39 = vector.broadcast %38 : vector<2x8x1xf32> to vector<2x8x128xf32>
    %40 = arith.mulf %39, %0 : vector<2x8x128xf32>
    %41 = arith.addf %37, %40 : vector<2x8x128xf32>
    %42 = vector.shape_cast %41 : vector<2x8x128xf32> to vector<16x128xf32>
    %c0_10 = arith.constant 0 : index
    %c0_11 = arith.constant 0 : index
    %43 = vector.load %arg3[%c0_10, %c0_11] : memref<128x128xf32, #tpu.memory_space<vmem>>, vector<128x128xf32>
    %cst_12 = arith.constant dense<0.000000e+00> : vector<16x128xf32>
    %44 = tpu.matmul %42, %43, %cst_12 {dimension_numbers = #tpu.dot_dimension_numbers<[1], [0], [0], [1], [0, 0, 1, 1], [], []>} : vector<16x128xf32>, vector<128x128xf32>, vector<16x128xf32> -> vector<16x128xf32>
    %c0_13 = arith.constant 0 : index
    %c0_14 = arith.constant 0 : index
    %45 = vector.load %arg4[%c0_13, %c0_14] : memref<1x128xf32, #tpu.memory_space<vmem>>, vector<1x128xf32>
    %46 = vector.broadcast %45 : vector<1x128xf32> to vector<16x128xf32>
    %47 = arith.addf %44, %46 : vector<16x128xf32>
    %48 = vector.shape_cast %47 : vector<16x128xf32> to vector<2x8x128xf32>
    %c0_15 = arith.constant 0 : index
    %c0_16 = arith.constant 0 : index
    %c0_17 = arith.constant 0 : index
    %49 = vector.load %arg5[%c0_15, %c0_16, %c0_17] : memref<2x8x128xf32, #tpu.memory_space<vmem>>, vector<2x8x128xf32>
    tpu.vector_store %arg5[%c0_15, %c0_16, %c0_17], %48 {strides = array<i32>} : memref<2x8x128xf32, #tpu.memory_space<vmem>>, vector<2x8x128xf32>,
    return
  }
  func.func @transform_0(%arg0: i32) -> (i32, i32, i32) {
    %c0_i32 = arith.constant 0 : i32
    %c0_i32_0 = arith.constant 0 : i32
    %c0_i32_1 = arith.constant 0 : i32
    return %arg0, %c0_i32, %c0_i32_0 : i32, i32, i32
  }
  func.func @transform_1(%arg0: i32) -> (i32, i32, i32) {
    %c0_i32 = arith.constant 0 : i32
    %c0_i32_0 = arith.constant 0 : i32
    %c0_i32_1 = arith.constant 0 : i32
    return %arg0, %c0_i32, %c0_i32_0 : i32, i32, i32
  }
  func.func @transform_2(%arg0: i32) -> (i32, i32) {
    %c0_i32 = arith.constant 0 : i32
    %c0_i32_0 = arith.constant 0 : i32
    %c0_i32_1 = arith.constant 0 : i32
    return %c0_i32, %c0_i32_0 : i32, i32
  }
  func.func @transform_3(%arg0: i32) -> (i32, i32) {
    %c0_i32 = arith.constant 0 : i32
    %c0_i32_0 = arith.constant 0 : i32
    %c0_i32_1 = arith.constant 0 : i32
    return %c0_i32, %c0_i32_0 : i32, i32
  }
  func.func @transform_4(%arg0: i32) -> (i32, i32, i32) {
    %c0_i32 = arith.constant 0 : i32
    %c0_i32_0 = arith.constant 0 : i32
    %c0_i32_1 = arith.constant 0 : i32
    return %arg0, %c0_i32, %c0_i32_0 : i32, i32, i32
  }
}

</mosaic_0001>

<llo_original>
// kernel: gnn_wrapper_forward.1
$region0: #{gnn_wrapper_forward.1}
  #allocation0 [shape = 'u32[]', space=smem, size = 0x4, offset = 0x4, fixed_abs, tag = 'smem constant byte address 0x4 - core index']
  #allocation1 [shape = 'u32[144,128]{1,0:T(1,128)}', space=vmem, size = 0x12000, scoped, tag = 'internal scratch']
  %s0 = inlined_call_operand.vmem [shape: f32[2,8,128], index: 0, kind: input, shape index: {}]
  %s1 = inlined_call_operand.vmem [shape: f32[2,8,8], index: 1, kind: input, shape index: {}]
  %s2 = inlined_call_operand.vmem [shape: f32[128,128], index: 2, kind: input, shape index: {}]
  %s3 = inlined_call_operand.vmem [shape: f32[1,128], index: 3, kind: input, shape index: {}]
  %s4 = inlined_call_operand.hbm [shape: f32[2,8,128], index: 4, kind: output, shape index: {}]
  %s5 = sld [smem:[#allocation0]]
  $region26: #{gnn_wrapper_forward.1} parent=0
    _
  %s7 = ssub.s32 1, %s5
  %s8 = scalar_select 0, %s7, %s5
  $region1: #{gnn_wrapper_forward.1} parent=0
    #allocation2 [shape = 'u8[8192]{0}', space=vmem, size = 0x2000, scoped, tag = 'output window, operand 0, single buffered']
    #allocation3 [shape = 's32[1]{0}', space=sflag, size = 0x4, scoped, tag = 'scoped memory for gnn_wrapper_forward.1']
    %9 = vsyncpa [#allocation3], 0
    // Predicated region
    $region2: #{gnn_wrapper_forward.1} parent=1 // pred_check
      _
    $region3: #{gnn_wrapper_forward.1} parent=1 // pred_check_branch
      %11 = sbr.rel (0) target = $region5
    $region4: #{gnn_wrapper_forward.1} parent=1 // pred_region
      _
    $region5: #{gnn_wrapper_forward.1} parent=1 // pred_fallthru
      _
    // Predicated region
    $region6: #{gnn_wrapper_forward.1} parent=1 // pred_check
      _
    $region7: #{gnn_wrapper_forward.1} parent=1 // pred_check_branch
      %13 = sbr.rel (0) target = $region9
    $region8: #{gnn_wrapper_forward.1} parent=1 // pred_region
      _
    $region9: #{gnn_wrapper_forward.1} parent=1 // pred_fallthru
      _
    // Predicated region
    $region10: #{gnn_wrapper_forward.1} parent=1 // pred_check
      _
    $region11: #{gnn_wrapper_forward.1} parent=1 // pred_check_branch
      %15 = sbr.rel (0) target = $region13
    $region12: #{gnn_wrapper_forward.1} parent=1 // pred_region
      _
    $region13: #{gnn_wrapper_forward.1} parent=1 // pred_fallthru
      _
    // Predicated region
    $region14: #{gnn_wrapper_forward.1} parent=1 // pred_check
      _
    $region15: #{gnn_wrapper_forward.1} parent=1 // pred_check_branch
      %17 = sbr.rel (0) target = $region17
    $region16: #{gnn_wrapper_forward.1} parent=1 // pred_region
      _
    $region17: #{gnn_wrapper_forward.1} parent=1 // pred_fallthru
      _
    %v19 = vld [vmem:[%s0] sm:$0xff]
    %v20 = vld [vmem:[%s0 + $0x8] sm:$0xff]
    %v21 = vld [vmem:[%s1] sm:$0xff]
    %v22 = vld [vmem:[%s1 + $0x8] sm:$0xff]
    %v23 = vlaneseq
    %v24 = vshrl.u32 %v23, 7
    %v25 = vlaneseq
    %v26 = vand.u32 %v25, 127
    %vm27 = vcmp.ne.s32.totalorder %v24, %v26
    %vm28 = vcmp.ne.f32.partialorder %v21, 0.0
    %vm29 = vcmp.ne.f32.partialorder %v22, 0.0
    %v30 = vsel %vm28, 1, 0
    %v31 = vsel %vm29, 1, 0
    %v32 = vcvt.s32.f32 %v30
    %v33 = vcvt.s32.f32 %v31
    %v34 = vsel %vm27, 1, 0
    %vm35 = vcmp.eq.s32.totalorder %v34, 1
    %v36 = vsel %vm35, %v32, 0.0
    %v37 = vsel %vm35, %v33, 0.0
    %vm38 = vcmask 64512
    %v39 = vsel %vm38, %v36, 0.0
    %v40 = vrot.slane %v39, 4
    %v41 = vadd.f32 %v39, %v40
    %v42 = vrot.slane %v41, 2
    %v43 = vadd.f32 %v41, %v42
    %v44 = vrot.slane %v43, 1
    %v45 = vadd.f32 %v43, %v44
    %v46 = vsel %vm38, %v37, 0.0
    %v47 = vrot.slane %v46, 4
    %v48 = vadd.f32 %v46, %v47
    %v49 = vrot.slane %v48, 2
    %v50 = vadd.f32 %v48, %v49
    %v51 = vrot.slane %v50, 1
    %v52 = vadd.f32 %v50, %v51
    %v53 = vadd.f32 %v45, 1.0
    %v54 = vadd.f32 %v52, 1.0
    %v55 = vrsqrt.pop %v53
    %v56 = vrsqrt.pop %v54
    %58 = vbcast.lane.b32.xlu0 %v55, 256
    %v59 = vpop.permute.xlu0 %58
    %61 = vbcast.lane.b32.xlu0 %v56, 256
    %v62 = vpop.permute.xlu0 %61
    %v63 = vmul.f32 %v59, %v19
    %v64 = vmul.f32 %v62, %v20
    %v65 = vpack.c.bf16 %v63, %v63
    %v66 = vpack.c.bf16 %v64, %v64
    %v67 = vpack.c.bf16 %v36, %v36
    %v68 = vpack.c.bf16 %v37, %v37
    %69 = vxpose.xlu0.c.b16.start [1/8] %v67, 128
    %70 = vxpose.xlu0.c.b16.cont [2/8] 0, 128
    %71 = vxpose.xlu0.c.b16.cont [3/8] 0, 128
    %72 = vxpose.xlu0.c.b16.cont [4/8] 0, 128
    %73 = vxpose.xlu0.c.b16.cont [5/8] 0, 128
    %74 = vxpose.xlu0.c.b16.cont [6/8] 0, 128
    %75 = vxpose.xlu0.c.b16.cont [7/8] 0, 128
    %76 = vxpose.xlu0.c.b16.end [8/8] 0, 128
    %v77 = vpop.trf.xlu0
    %v78 = vpop.trf.xlu0
    %v79 = vpop.trf.xlu0
    %v80 = vpop.trf.xlu0
    %v81 = vpop.trf.xlu0
    %v82 = vpop.trf.xlu0
    %v83 = vpop.trf.xlu0
    %v84 = vpop.trf.xlu0
    %v86 = vsel %vm38, %v77, 0
    %vm88 = vcmask 1043456
    %v90 = vsel %vm88, %v65, 0
    %92 = vmatprep.subr.bf16.mxu0 0
    %93 = vmatpush1.bf16.msra.mxu0 %v90
    %94 = vmatprep.subr.bf16.mxu0 0
    %95 = vmatpush1.bf16.msra.mxu0 0
    %96 = vmatprep.subr.bf16.mxu0 0
    %97 = vmatpush1.bf16.msra.mxu0 0
    %98 = vmatprep.subr.bf16.mxu0 0
    %99 = vmatpush1.bf16.msra.mxu0 0
    %100 = vmatprep.subr.bf16.mxu0 0
    %101 = vmatpush1.bf16.msra.mxu0 0
    %102 = vmatprep.subr.bf16.mxu0 0
    %103 = vmatpush1.bf16.msra.mxu0 0
    %104 = vmatprep.subr.bf16.mxu0 0
    %105 = vmatpush1.bf16.msra.mxu0 0
    %106 = vmatprep.subr.bf16.mxu0 0
    %107 = vmatpush1.bf16.msra.mxu0 0
    %108 = vmatprep.subr.bf16.mxu0 0
    %109 = vmatpush1.bf16.msra.mxu0 0
    %110 = vmatprep.subr.bf16.mxu0 0
    %111 = vmatpush1.bf16.msra.mxu0 0
    %112 = vmatprep.subr.bf16.mxu0 0
    %113 = vmatpush1.bf16.msra.mxu0 0
    %114 = vmatprep.subr.bf16.mxu0 0
    %115 = vmatpush1.bf16.msra.mxu0 0
    %116 = vmatprep.subr.bf16.mxu0 0
    %117 = vmatpush1.bf16.msra.mxu0 0
    %118 = vmatprep.subr.bf16.mxu0 0
    %119 = vmatpush1.bf16.msra.mxu0 0
    %120 = vmatprep.subr.bf16.mxu0 0
    %121 = vmatpush1.bf16.msra.mxu0 0
    %122 = vmatprep.subr.bf16.mxu0 0
    %123 = vmatpush1.bf16.msra.mxu0 0
    %124 = vmatprep.mubr.bf16.mxu0 0
    %125 = vmatmul.mubr.bf16.gmra.mrb[0].mxu0 %v86
    %v126 = vpop.f32.mrb[0].mxu0
    %v127 = vadd.f32 0.0, %v126
    %v128 = vpop.f32.mrb[0].mxu0
    %v129 = vpop.f32.mrb[0].mxu0
    %v130 = vpop.f32.mrb[0].mxu0
    %131 = vdwg.mxu0
    %132 = vxpose.xlu0.c.b16.start [1/8] %v68, 128
    %133 = vxpose.xlu0.c.b16.cont [2/8] 0, 128
    %134 = vxpose.xlu0.c.b16.cont [3/8] 0, 128
    %135 = vxpose.xlu0.c.b16.cont [4/8] 0, 128
    %136 = vxpose.xlu0.c.b16.cont [5/8] 0, 128
    %137 = vxpose.xlu0.c.b16.cont [6/8] 0, 128
    %138 = vxpose.xlu0.c.b16.cont [7/8] 0, 128
    %139 = vxpose.xlu0.c.b16.end [8/8] 0, 128
    %v140 = vpop.trf.xlu0
    %v141 = vpop.trf.xlu0
    %v142 = vpop.trf.xlu0
    %v143 = vpop.trf.xlu0
    %v144 = vpop.trf.xlu0
    %v145 = vpop.trf.xlu0
    %v146 = vpop.trf.xlu0
    %v147 = vpop.trf.xlu0
    %v149 = vsel %vm38, %v140, 0
    %v152 = vsel %vm88, %v66, 0
    %154 = vmatprep.subr.bf16.mxu0 0
    %155 = vmatpush1.bf16.msra.mxu0 %v152
    %156 = vmatprep.subr.bf16.mxu0 0
    %157 = vmatpush1.bf16.msra.mxu0 0
    %158 = vmatprep.subr.bf16.mxu0 0
    %159 = vmatpush1.bf16.msra.mxu0 0
    %160 = vmatprep.subr.bf16.mxu0 0
    %161 = vmatpush1.bf16.msra.mxu0 0
    %162 = vmatprep.subr.bf16.mxu0 0
    %163 = vmatpush1.bf16.msra.mxu0 0
    %164 = vmatprep.subr.bf16.mxu0 0
    %165 = vmatpush1.bf16.msra.mxu0 0
    %166 = vmatprep.subr.bf16.mxu0 0
    %167 = vmatpush1.bf16.msra.mxu0 0
    %168 = vmatprep.subr.bf16.mxu0 0
    %169 = vmatpush1.bf16.msra.mxu0 0
    %170 = vmatprep.subr.bf16.mxu0 0
    %171 = vmatpush1.bf16.msra.mxu0 0
    %172 = vmatprep.subr.bf16.mxu0 0
    %173 = vmatpush1.bf16.msra.mxu0 0
    %174 = vmatprep.subr.bf16.mxu0 0
    %175 = vmatpush1.bf16.msra.mxu0 0
    %176 = vmatprep.subr.bf16.mxu0 0
    %177 = vmatpush1.bf16.msra.mxu0 0
    %178 = vmatprep.subr.bf16.mxu0 0
    %179 = vmatpush1.bf16.msra.mxu0 0
    %180 = vmatprep.subr.bf16.mxu0 0
    %181 = vmatpush1.bf16.msra.mxu0 0
    %182 = vmatprep.subr.bf16.mxu0 0
    %183 = vmatpush1.bf16.msra.mxu0 0
    %184 = vmatprep.subr.bf16.mxu0 0
    %185 = vmatpush1.bf16.msra.mxu0 0
    %186 = vmatprep.mubr.bf16.mxu0 0
    %187 = vmatmul.mubr.bf16.gmra.mrb[0].mxu0 %v149
    %v188 = vpop.f32.mrb[0].mxu0
    %v189 = vadd.f32 0.0, %v188
    %v190 = vpop.f32.mrb[0].mxu0
    %v191 = vpop.f32.mrb[0].mxu0
    %v192 = vpop.f32.mrb[0].mxu0
    %193 = vdwg.mxu0
    %v194 = vmul.f32 %v59, %v127
    %v195 = vmul.f32 %v62, %v189
    %v196 = vmul.f32 %v59, %v59
    %v197 = vmul.f32 %v62, %v62
    %v198 = vmul.f32 %v196, %v19
    %v199 = vmul.f32 %v197, %v20
    %v200 = vadd.f32 %v194, %v198
    %v201 = vadd.f32 %v195, %v199
    %v202 = vld [vmem:[%s2] sm:$0xff]
    %v203 = vld [vmem:[%s2 + $0x8] sm:$0xff]
    %v204 = vld [vmem:[%s2 + $0x10] sm:$0xff]
    %v205 = vld [vmem:[%s2 + $0x18] sm:$0xff]
    %v206 = vld [vmem:[%s2 + $0x20] sm:$0xff]
    %v207 = vld [vmem:[%s2 + $0x28] sm:$0xff]
    %v208 = vld [vmem:[%s2 + $0x30] sm:$0xff]
    %v209 = vld [vmem:[%s2 + $0x38] sm:$0xff]
    %v210 = vld [vmem:[%s2 + $0x40] sm:$0xff]
    %v211 = vld [vmem:[%s2 + $0x48] sm:$0xff]
    %v212 = vld [vmem:[%s2 + $0x50] sm:$0xff]
    %v213 = vld [vmem:[%s2 + $0x58] sm:$0xff]
    %v214 = vld [vmem:[%s2 + $0x60] sm:$0xff]
    %v215 = vld [vmem:[%s2 + $0x68] sm:$0xff]
    %v216 = vld [vmem:[%s2 + $0x70] sm:$0xff]
    %v217 = vld [vmem:[%s2 + $0x78] sm:$0xff]
    %v218 = vld [vmem:[%s3] sm:$0x1]
    %v220 = vlaneseq
    %v221 = vshrl.u32 %v220, 7
    %v222 = vsub.s32 0, %v221
    %v223 = vrot.slane %v218, %v222
    %225 = vmatprep.subr.mxu0 0.0
    %226 = vmatpush1.msra.mxu0 %v202
    %227 = vmatprep.subr.mxu0 0.0
    %228 = vmatpush1.msra.mxu0 %v203
    %229 = vmatprep.subr.mxu0 0.0
    %230 = vmatpush1.msra.mxu0 %v204
    %231 = vmatprep.subr.mxu0 0.0
    %232 = vmatpush1.msra.mxu0 %v205
    %233 = vmatprep.subr.mxu0 0.0
    %234 = vmatpush1.msra.mxu0 %v206
    %235 = vmatprep.subr.mxu0 0.0
    %236 = vmatpush1.msra.mxu0 %v207
    %237 = vmatprep.subr.mxu0 0.0
    %238 = vmatpush1.msra.mxu0 %v208
    %239 = vmatprep.subr.mxu0 0.0
    %240 = vmatpush1.msra.mxu0 %v209
    %241 = vmatprep.subr.mxu0 0.0
    %242 = vmatpush1.msra.mxu0 %v210
    %243 = vmatprep.subr.mxu0 0.0
    %244 = vmatpush1.msra.mxu0 %v211
    %245 = vmatprep.subr.mxu0 0.0
    %246 = vmatpush1.msra.mxu0 %v212
    %247 = vmatprep.subr.mxu0 0.0
    %248 = vmatpush1.msra.mxu0 %v213
    %249 = vmatprep.subr.mxu0 0.0
    %250 = vmatpush1.msra.mxu0 %v214
    %251 = vmatprep.subr.mxu0 0.0
    %252 = vmatpush1.msra.mxu0 %v215
    %253 = vmatprep.subr.mxu0 0.0
    %254 = vmatpush1.msra.mxu0 %v216
    %255 = vmatprep.subr.mxu0 0.0
    %256 = vmatpush1.msra.mxu0 %v217
    %257 = vmatprep.subr.mxu0 0.0
    %258 = vmatpush1.msra.mxu0 0.0
    %259 = vmatprep.subr.mxu0 0.0
    %260 = vmatpush1.msra.mxu0 0.0
    %261 = vmatprep.subr.mxu0 0.0
    %262 = vmatpush1.msra.mxu0 0.0
    %263 = vmatprep.subr.mxu0 0.0
    %264 = vmatpush1.msra.mxu0 0.0
    %265 = vmatprep.subr.mxu0 0.0
    %266 = vmatpush1.msra.mxu0 0.0
    %267 = vmatprep.subr.mxu0 0.0
    %268 = vmatpush1.msra.mxu0 0.0
    %269 = vmatprep.subr.mxu0 0.0
    %270 = vmatpush1.msra.mxu0 0.0
    %271 = vmatprep.subr.mxu0 0.0
    %272 = vmatpush1.msra.mxu0 0.0
    %273 = vmatprep.subr.mxu0 0.0
    %274 = vmatpush1.msra.mxu0 0.0
    %275 = vmatprep.subr.mxu0 0.0
    %276 = vmatpush1.msra.mxu0 0.0
    %277 = vmatprep.subr.mxu0 0.0
    %278 = vmatpush1.msra.mxu0 0.0
    %279 = vmatprep.subr.mxu0 0.0
    %280 = vmatpush1.msra.mxu0 0.0
    %281 = vmatprep.subr.mxu0 0.0
    %282 = vmatpush1.msra.mxu0 0.0
    %283 = vmatprep.subr.mxu0 0.0
    %284 = vmatpush1.msra.mxu0 0.0
    %285 = vmatprep.subr.mxu0 0.0
    %286 = vmatpush1.msra.mxu0 0.0
    %287 = vmatprep.subr.mxu0 0.0
    %288 = vmatpush1.msra.mxu0 0.0
    %289 = vmatprep.mubr.f32.mxu0 0.0
    %290 = vmatmul.mubr.f32.gmra.mrb[0].mxu0 %v200
    %v291 = vpop.f32.mrb[0].mxu0
    %v292 = vadd.f32 %v223, %v291
    %v293 = vpop.f32.mrb[0].mxu0
    %294 = vmatprep.mubr.f32.mxu0 0.0
    %295 = vmatmul.mubr.f32.gmra.mrb[0].mxu0 %v201
    %v296 = vpop.f32.mrb[0].mxu0
    %v297 = vadd.f32 %v223, %v296
    %v298 = vpop.f32.mrb[0].mxu0
    %299 = vdwg.mxu0
    %300 = vst [vmem:[#allocation2] sm:$0xff] %v292
    %301 = vst [vmem:[#allocation2 + $0x8] sm:$0xff] %v297
    // Predicated region
    $region18: #{gnn_wrapper_forward.1} parent=1 // pred_check
      _
    $region19: #{gnn_wrapper_forward.1} parent=1 // pred_check_branch
      %303 = sbr.rel (0) target = $region21
    $region20: #{gnn_wrapper_forward.1} parent=1 // pred_region
      %s305 = ssub.s32 256, 256
      %306 = vsyncadd [#allocation3], %s305
      %s307 = sshll.u32 [#allocation2], 4
      %s308 = int_to_ptr.vmem [resolvable:$true] %s307
      %313 = dma.vmem_to_hbm [thread:$0]  %s308, 256, %s4, [#allocation3], 128, 128, 8
    $region21: #{gnn_wrapper_forward.1} parent=1 // pred_fallthru
      _
    // Predicated region
    $region22: #{gnn_wrapper_forward.1} parent=1 // pred_check
      _
    $region23: #{gnn_wrapper_forward.1} parent=1 // pred_check_branch
      %315 = sbr.rel (0) target = $region25
    $region24: #{gnn_wrapper_forward.1} parent=1 // pred_region
      %316 = dma.done [#allocation3], 256
    $region25: #{gnn_wrapper_forward.1} parent=1 // pred_fallthru
      _
    %317 = vsyncpa [#allocation3], 1

</llo_original>
